<compile_context>
chip_gen: v7x
topology: tpu7x:2x2x1
jax: 0.10.0
libtpu: 0.0.40
codegen_flags: <defaults>
</compile_context>

<pallas_src>
import functools

import jax
import jax.numpy as jnp
import numpy as np
from jax.experimental import pallas as pl
from jax.experimental.pallas import tpu as pltpu

SELU_ALPHA = 1.6732632423543772
SELU_SCALE = 1.0507009873554805
LANE = 128


def _selu(x):
    return SELU_SCALE * jnp.where(x > 0.0, x, SELU_ALPHA * (jnp.exp(x) - 1.0))


# ---------------------------------------------------------------------------
# Kernel: fused actor+critic MLP over one batch tile.
#
# Host-side packing (see pack_params):
#   w0s    [prop, F]  bf16 = sw @ [aw0|cw0][:emb]   (state encoder folded in)
#   w0o    [emb,  F]  bf16 = [aw0|cw0][emb:]
#   wstack [3, F, F]  bf16 = [blockdiag(aw1,cw1), blockdiag(aw2,cw2), final]
#                            final: rows 0:H cols 0:A = aw3,
#                                   rows H:F col  A   = cw3
#   bias   [8, F]     f32  = rows: b0' (folded), b1, b2, b3, 0, 0, 0, 0
#
# Output slab [tile_b, F]: lanes 0..A-1 = actions_mean, lane A = value.
# ---------------------------------------------------------------------------
def _policy_kernel(state_ref, obs_emb_ref, w0s_ref, w0o_ref, wstack_ref,
                   bias_ref, out_ref):
    f32 = jnp.float32
    bf16 = jnp.bfloat16

    # layer 0 of actor||critic; state encoder pre-folded into w0s / bias row 0
    pre0 = (jnp.dot(state_ref[...].astype(bf16), w0s_ref[...],
                    preferred_element_type=f32)
            + jnp.dot(obs_emb_ref[...].astype(bf16), w0o_ref[...],
                      preferred_element_type=f32)
            + bias_ref[0:1, :])
    hg = _selu(pre0)                        # [B, F] = actor h | critic g (f32)

    # hidden layers 1-2: block-diagonal fused weights, 128-wide bf16 matmuls
    hg = _selu(jnp.dot(hg.astype(bf16), wstack_ref[0],
                       preferred_element_type=f32) + bias_ref[1:2, :])
    hg = _selu(jnp.dot(hg.astype(bf16), wstack_ref[1],
                       preferred_element_type=f32) + bias_ref[2:3, :])

    # final packed heads -> single lane-dense output slab
    out = jnp.dot(hg.astype(bf16), wstack_ref[2],
                  preferred_element_type=f32) + bias_ref[3:4, :]
    out_ref[...] = out.astype(out_ref.dtype)


def _pick_tile_b(batch, requested):
    """Largest sublane-aligned tile <= requested that divides the batch.
    Keeps grid >= 2 whenever the batch allows, so ("parallel",) can shard the
    batch across both v7x TensorCores."""
    requested = max(8, (requested // 8) * 8)
    if batch <= requested:
        if batch % 16 == 0 and batch >= 16:
            return batch // 2           # two tiles -> both TCs get work
        return batch
    t = requested
    while t > 8 and batch % t != 0:
        t -= 8
    return t if batch % t == 0 else batch


def actor_critic_forward(state, obs_emb, packed, *, n_actions, tile_b=1024,
                         out_dtype=jnp.float32):
    """Returns (actions_mean [B, A], value [B, 1])."""
    B, prop_dim = state.shape
    emb_dim = obs_emb.shape[1]
    F = packed["w0o"].shape[1]           # fused actor|critic width (lane-dense)
    tb = _pick_tile_b(B, tile_b)
    assert B % tb == 0, "batch must be divisible by the chosen batch tile"
    grid = (B // tb,)

    out = pl.pallas_call(
        _policy_kernel,
        out_shape=jax.ShapeDtypeStruct((B, F), out_dtype),
        grid=grid,
        in_specs=[
            pl.BlockSpec((tb, prop_dim), lambda i: (i, 0)),
            pl.BlockSpec((tb, emb_dim), lambda i: (i, 0)),
            pl.BlockSpec(packed["w0s"].shape, lambda i: (0, 0)),
            pl.BlockSpec(packed["w0o"].shape, lambda i: (0, 0)),
            pl.BlockSpec(packed["wstack"].shape, lambda i: (0, 0, 0)),
            pl.BlockSpec(packed["bias"].shape, lambda i: (0, 0)),
        ],
        out_specs=pl.BlockSpec((tb, F), lambda i: (i, 0)),
        compiler_params=pltpu.CompilerParams(
            dimension_semantics=("parallel",)),
    )(state, obs_emb, packed["w0s"], packed["w0o"], packed["wstack"],
      packed["bias"])

    mean = out[:, :n_actions].astype(jnp.float32)
    value = out[:, n_actions:n_actions + 1].astype(jnp.float32)
    return mean, value


# ------------------------- host-side parameter packing ----------------------
def pack_params(p, emb_dim, hidden, n_actions):
    H = hidden[0]
    assert len(hidden) == 3 and all(h == H for h in hidden), \
        "packing assumes 3 equal hidden layers"
    F = 2 * H
    assert F % LANE == 0, "fused actor|critic width must be a multiple of 128"
    assert n_actions + 1 <= F
    A = n_actions

    def zeros(r, c):
        return jnp.zeros((r, c), jnp.float32)

    def bdiag(a, c):
        top = jnp.concatenate([a, zeros(a.shape[0], c.shape[1])], axis=1)
        bot = jnp.concatenate([zeros(c.shape[0], a.shape[1]), c], axis=1)
        return jnp.concatenate([top, bot], axis=0)

    # Layer 0 of actor||critic with the state encoder folded in.
    # Fold is done in f32; a single bf16 rounding happens at the end.
    w0 = jnp.concatenate([p["aw0"], p["cw0"]], axis=1)            # [2*emb, F]
    w0_state_rows = w0[:emb_dim, :]
    w0s = p["sw"] @ w0_state_rows                                 # [prop, F]
    w0o = w0[emb_dim:, :]                                         # [emb, F]
    b0_folded = (jnp.concatenate([p["ab0"], p["cb0"]], axis=1)
                 + p["sb"] @ w0_state_rows)                       # [1, F]

    w1 = bdiag(p["aw1"], p["cw1"])                                # [F, F]
    w2 = bdiag(p["aw2"], p["cw2"])                                # [F, F]
    w3 = zeros(F, F)
    w3 = w3.at[0:H, 0:A].set(p["aw3"]).at[H:F, A:A + 1].set(p["cw3"])

    bias = zeros(8, F)
    bias = bias.at[0, :].set(b0_folded[0])
    bias = bias.at[1, :].set(jnp.concatenate([p["ab1"], p["cb1"]], axis=1)[0])
    bias = bias.at[2, :].set(jnp.concatenate([p["ab2"], p["cb2"]], axis=1)[0])
    bias = bias.at[3, 0:A].set(p["ab3"][0]).at[3, A:A + 1].set(p["cb3"][0])

    return {
        "w0s": w0s.astype(jnp.bfloat16),
        "w0o": w0o.astype(jnp.bfloat16),
        "wstack": jnp.stack([w1, w2, w3]).astype(jnp.bfloat16),
        "bias": bias,                               # biases stay f32
    }


# ------------------------------ initialization -------------------------------
def _linear_params(key, in_dim, out_dim, gain):
    """Orthogonal weight (gain) in [in, out] layout + uniform bias, like torch."""
    kw, kb = jax.random.split(key)
    w = jax.nn.initializers.orthogonal(scale=gain)(kw, (in_dim, out_dim),
                                                   jnp.float32)
    bound = 1.0 / np.sqrt(in_dim)
    b = jax.random.uniform(kb, (1, out_dim), jnp.float32, -bound, bound)
    return w, b


def build_params(key, prop_dim, emb_dim, hidden, n_actions):
    keys = jax.random.split(key, 16)
    p = {}
    p["sw"], p["sb"] = _linear_params(keys[0], prop_dim, emb_dim, 1.0)

    actor_dims = [2 * emb_dim] + list(hidden) + [n_actions]
    actor_gains = [np.sqrt(2.0)] * len(hidden) + [0.01]
    for i in range(4):
        w, b = _linear_params(keys[1 + i], actor_dims[i], actor_dims[i + 1],
                              actor_gains[i])
        p[f"aw{i}"], p[f"ab{i}"] = w, b

    critic_dims = [2 * emb_dim] + list(hidden) + [1]
    critic_gains = [np.sqrt(2.0)] * len(hidden) + [1.0]
    for i in range(4):
        w, b = _linear_params(keys[5 + i], critic_dims[i], critic_dims[i + 1],
                              critic_gains[i])
        p[f"cw{i}"], p[f"cb{i}"] = w, b
    return p


# ------------------------- evaluate (kernel + dist glue) ---------------------
@functools.partial(jax.jit, static_argnames=("n_actions",))
def evaluate(state, obs_emb, actions, packed, log_std, *, n_actions):
    mean, value = actor_critic_forward(state, obs_emb, packed,
                                       n_actions=n_actions)
    # PyTorch source: MultivariateNormal(mean, scale_tril=diag(exp(log_std)^2))
    # -> the per-dimension std is exp(log_std)**2 (the module passes the squared
    # term as scale_tril, NOT as a covariance matrix), so this matches exactly.
    std_eff = jnp.exp(log_std) ** 2
    k = n_actions
    log_prob = (-0.5 * jnp.sum(((actions - mean) / std_eff) ** 2, axis=1)
                - jnp.sum(jnp.log(std_eff))
                - 0.5 * k * jnp.log(2.0 * jnp.pi))
    entropy = (0.5 * k * (1.0 + jnp.log(2.0 * jnp.pi))
               + jnp.sum(jnp.log(std_eff))) * jnp.ones(mean.shape[0])
    return log_prob, entropy, value, mean


# ------------------------------- JAX reference --------------------------------
def _reference_forward(state, obs_emb, p):
    state_emb = state @ p["sw"] + p["sb"]
    joint = jnp.concatenate([state_emb, obs_emb], axis=1)

    def mlp(x, pre):
        h = _selu(x @ p[f"{pre}w0"] + p[f"{pre}b0"])
        h = _selu(h @ p[f"{pre}w1"] + p[f"{pre}b1"])
        h = _selu(h @ p[f"{pre}w2"] + p[f"{pre}b2"])
        return h @ p[f"{pre}w3"] + p[f"{pre}b3"]

    return mlp(joint, "a"), mlp(joint, "c")


if __name__ == "__main__":
    # Small, module-consistent shapes (B=64 so the grid has 2 tiles).
    B = 64           # batch
    PROP_DIM = 16    # env_cfg['obs_dim']['prop']
    EMB_DIM = 32     # encoder_cfg['emb_dim']
    HIDDEN = [64, 64, 64]   # pi/vf hidden sizes (fused width F = 128)
    N_ACTIONS = 8
    INITIAL_STD = 1.0

    key = jax.random.PRNGKey(0)
    k_param, k_state, k_emb, k_act = jax.random.split(key, 4)

    raw = build_params(k_param, PROP_DIM, EMB_DIM, HIDDEN, N_ACTIONS)
    # Round weights to bf16 once; kernel packing and the reference use the same
    # rounded values, so the check validates kernel math + fold/packing rather
    # than bf16 quantization fidelity vs. an f32 checkpoint.
    params = {k: (v.astype(jnp.bfloat16).astype(jnp.float32) if "w" in k else v)
              for k, v in raw.items()}
    packed = pack_params(params, EMB_DIM, HIDDEN, N_ACTIONS)

    log_std = jnp.full((N_ACTIONS,), np.log(INITIAL_STD), jnp.float32)

    state = jax.random.normal(k_state, (B, PROP_DIM), jnp.float32)
    obs_emb = jax.random.normal(k_emb, (B, EMB_DIM), jnp.float32)
    actions = jax.random.normal(k_act, (B, N_ACTIONS), jnp.float32)

    log_prob, entropy, value, actions_mean = evaluate(
        state, obs_emb, actions, packed, log_std, n_actions=N_ACTIONS)
    jax.block_until_ready((log_prob, entropy, value, actions_mean))

    # Correctness check vs. a plain-JAX f32 reference of the original
    # (unfolded) module math.  Residual error = bf16 activation casts inside
    # the kernel + the f32 state-encoder fold re-rounded to bf16.
    ref_mean, ref_value = _reference_forward(state, obs_emb, params)
    err_mean = float(jnp.max(jnp.abs(actions_mean - ref_mean)))
    err_value = float(jnp.max(jnp.abs(value - ref_value)))
    assert err_mean < 1e-2, f"actions_mean mismatch: {err_mean}"
    assert err_value < 5e-2, f"value mismatch: {err_value}"

    print("KERNEL_OK")
</pallas_src>

<mosaic_0001>
module attributes {stable_mosaic.version = 11 : i64} {
  func.func @_policy_kernel(%arg0: i32, %arg1: memref<32x16xf32, #tpu.memory_space<vmem>>, %arg2: memref<32x32xf32, #tpu.memory_space<vmem>>, %arg3: memref<16x128xbf16, #tpu.memory_space<vmem>>, %arg4: memref<32x128xbf16, #tpu.memory_space<vmem>>, %arg5: memref<3x128x128xbf16, #tpu.memory_space<vmem>>, %arg6: memref<8x128xf32, #tpu.memory_space<vmem>>, %arg7: memref<32x128xf32, #tpu.memory_space<vmem>>) attributes {dimension_semantics = [#tpu.dimension_semantics<parallel>], iteration_bounds = array<i64: 2>, scalar_prefetch = 0 : i64, scratch_operands = 0 : i64, tpu.core_type = #tpu.core_type<tc>, window_params = [{transform_indices = @transform_0, window_bounds = array<i64: 32, 16>}, {transform_indices = @transform_1, window_bounds = array<i64: 32, 32>}, {pipeline_mode = #tpu.pipeline_mode<synchronous>, transform_indices = @transform_2, window_bounds = array<i64: 16, 128>}, {pipeline_mode = #tpu.pipeline_mode<synchronous>, transform_indices = @transform_3, window_bounds = array<i64: 32, 128>}, {pipeline_mode = #tpu.pipeline_mode<synchronous>, transform_indices = @transform_4, window_bounds = array<i64: 3, 128, 128>}, {pipeline_mode = #tpu.pipeline_mode<synchronous>, transform_indices = @transform_5, window_bounds = array<i64: 8, 128>}, {transform_indices = @transform_6, window_bounds = array<i64: 32, 128>}]} {
    %c0 = arith.constant 0 : index
    %c0_0 = arith.constant 0 : index
    %0 = vector.load %arg1[%c0, %c0_0] : memref<32x16xf32, #tpu.memory_space<vmem>>, vector<32x16xf32>
    %1 = arith.truncf %0 : vector<32x16xf32> to vector<32x16xbf16>
    %c0_1 = arith.constant 0 : index
    %c0_2 = arith.constant 0 : index
    %2 = vector.load %arg3[%c0_1, %c0_2] : memref<16x128xbf16, #tpu.memory_space<vmem>>, vector<16x128xbf16>
    %cst = arith.constant dense<0.000000e+00> : vector<32x128xf32>
    %3 = tpu.matmul %1, %2, %cst {dimension_numbers = #tpu.dot_dimension_numbers<[1], [0], [0], [1], [0, 0, 1, 1], [], []>} : vector<32x16xbf16>, vector<16x128xbf16>, vector<32x128xf32> -> vector<32x128xf32>
    %c0_3 = arith.constant 0 : index
    %c0_4 = arith.constant 0 : index
    %4 = vector.load %arg2[%c0_3, %c0_4] : memref<32x32xf32, #tpu.memory_space<vmem>>, vector<32x32xf32>
    %5 = arith.truncf %4 : vector<32x32xf32> to vector<32x32xbf16>
    %c0_5 = arith.constant 0 : index
    %c0_6 = arith.constant 0 : index
    %6 = vector.load %arg4[%c0_5, %c0_6] : memref<32x128xbf16, #tpu.memory_space<vmem>>, vector<32x128xbf16>
    %cst_7 = arith.constant dense<0.000000e+00> : vector<32x128xf32>
    %7 = tpu.matmul %5, %6, %cst_7 {dimension_numbers = #tpu.dot_dimension_numbers<[1], [0], [0], [1], [0, 0, 1, 1], [], []>} : vector<32x32xbf16>, vector<32x128xbf16>, vector<32x128xf32> -> vector<32x128xf32>
    %8 = arith.addf %3, %7 : vector<32x128xf32>
    %c0_8 = arith.constant 0 : index
    %c0_9 = arith.constant 0 : index
    %9 = vector.load %arg6[%c0_8, %c0_9] : memref<8x128xf32, #tpu.memory_space<vmem>>, vector<1x128xf32>
    %10 = vector.broadcast %9 : vector<1x128xf32> to vector<32x128xf32>
    %11 = arith.addf %8, %10 : vector<32x128xf32>
    %cst_10 = arith.constant 0.000000e+00 : f32
    %12 = vector.broadcast %cst_10 : f32 to vector<32x128xf32>
    %13 = arith.cmpf ogt, %11, %12 : vector<32x128xf32>
    %14 = math.exp %11 : vector<32x128xf32>
    %cst_11 = arith.constant 1.000000e+00 : f32
    %15 = vector.broadcast %cst_11 : f32 to vector<32x128xf32>
    %16 = arith.subf %14, %15 : vector<32x128xf32>
    %cst_12 = arith.constant 1.67326319 : f32
    %17 = vector.broadcast %cst_12 : f32 to vector<32x128xf32>
    %18 = arith.mulf %17, %16 : vector<32x128xf32>
    %19 = arith.select %13, %11, %18 : vector<32x128xi1>, vector<32x128xf32>
    %cst_13 = arith.constant 1.05070102 : f32
    %20 = vector.broadcast %cst_13 : f32 to vector<32x128xf32>
    %21 = arith.mulf %20, %19 : vector<32x128xf32>
    %22 = arith.truncf %21 : vector<32x128xf32> to vector<32x128xbf16>
    %c0_14 = arith.constant 0 : index
    %c0_15 = arith.constant 0 : index
    %c0_16 = arith.constant 0 : index
    %23 = vector.load %arg5[%c0_14, %c0_15, %c0_16] : memref<3x128x128xbf16, #tpu.memory_space<vmem>>, vector<1x128x128xbf16>
    %24 = vector.shape_cast %23 : vector<1x128x128xbf16> to vector<128x128xbf16>
    %cst_17 = arith.constant dense<0.000000e+00> : vector<32x128xf32>
    %25 = tpu.matmul %22, %24, %cst_17 {dimension_numbers = #tpu.dot_dimension_numbers<[1], [0], [0], [1], [0, 0, 1, 1], [], []>} : vector<32x128xbf16>, vector<128x128xbf16>, vector<32x128xf32> -> vector<32x128xf32>
    %c1 = arith.constant 1 : index
    %c0_18 = arith.constant 0 : index
    %26 = vector.load %arg6[%c1, %c0_18] : memref<8x128xf32, #tpu.memory_space<vmem>>, vector<1x128xf32>
    %27 = vector.broadcast %26 : vector<1x128xf32> to vector<32x128xf32>
    %28 = arith.addf %25, %27 : vector<32x128xf32>
    %cst_19 = arith.constant 0.000000e+00 : f32
    %29 = vector.broadcast %cst_19 : f32 to vector<32x128xf32>
    %30 = arith.cmpf ogt, %28, %29 : vector<32x128xf32>
    %31 = math.exp %28 : vector<32x128xf32>
    %cst_20 = arith.constant 1.000000e+00 : f32
    %32 = vector.broadcast %cst_20 : f32 to vector<32x128xf32>
    %33 = arith.subf %31, %32 : vector<32x128xf32>
    %cst_21 = arith.constant 1.67326319 : f32
    %34 = vector.broadcast %cst_21 : f32 to vector<32x128xf32>
    %35 = arith.mulf %34, %33 : vector<32x128xf32>
    %36 = arith.select %30, %28, %35 : vector<32x128xi1>, vector<32x128xf32>
    %cst_22 = arith.constant 1.05070102 : f32
    %37 = vector.broadcast %cst_22 : f32 to vector<32x128xf32>
    %38 = arith.mulf %37, %36 : vector<32x128xf32>
    %39 = arith.truncf %38 : vector<32x128xf32> to vector<32x128xbf16>
    %c1_23 = arith.constant 1 : index
    %c0_24 = arith.constant 0 : index
    %c0_25 = arith.constant 0 : index
    %40 = vector.load %arg5[%c1_23, %c0_24, %c0_25] : memref<3x128x128xbf16, #tpu.memory_space<vmem>>, vector<1x128x128xbf16>
    %41 = vector.shape_cast %40 : vector<1x128x128xbf16> to vector<128x128xbf16>
    %cst_26 = arith.constant dense<0.000000e+00> : vector<32x128xf32>
    %42 = tpu.matmul %39, %41, %cst_26 {dimension_numbers = #tpu.dot_dimension_numbers<[1], [0], [0], [1], [0, 0, 1, 1], [], []>} : vector<32x128xbf16>, vector<128x128xbf16>, vector<32x128xf32> -> vector<32x128xf32>
    %c2 = arith.constant 2 : index
    %c0_27 = arith.constant 0 : index
    %43 = vector.load %arg6[%c2, %c0_27] : memref<8x128xf32, #tpu.memory_space<vmem>>, vector<1x128xf32>
    %44 = vector.broadcast %43 : vector<1x128xf32> to vector<32x128xf32>
    %45 = arith.addf %42, %44 : vector<32x128xf32>
    %cst_28 = arith.constant 0.000000e+00 : f32
    %46 = vector.broadcast %cst_28 : f32 to vector<32x128xf32>
    %47 = arith.cmpf ogt, %45, %46 : vector<32x128xf32>
    %48 = math.exp %45 : vector<32x128xf32>
    %cst_29 = arith.constant 1.000000e+00 : f32
    %49 = vector.broadcast %cst_29 : f32 to vector<32x128xf32>
    %50 = arith.subf %48, %49 : vector<32x128xf32>
    %cst_30 = arith.constant 1.67326319 : f32
    %51 = vector.broadcast %cst_30 : f32 to vector<32x128xf32>
    %52 = arith.mulf %51, %50 : vector<32x128xf32>
    %53 = arith.select %47, %45, %52 : vector<32x128xi1>, vector<32x128xf32>
    %cst_31 = arith.constant 1.05070102 : f32
    %54 = vector.broadcast %cst_31 : f32 to vector<32x128xf32>
    %55 = arith.mulf %54, %53 : vector<32x128xf32>
    %56 = arith.truncf %55 : vector<32x128xf32> to vector<32x128xbf16>
    %c2_32 = arith.constant 2 : index
    %c0_33 = arith.constant 0 : index
    %c0_34 = arith.constant 0 : index
    %57 = vector.load %arg5[%c2_32, %c0_33, %c0_34] : memref<3x128x128xbf16, #tpu.memory_space<vmem>>, vector<1x128x128xbf16>
    %58 = vector.shape_cast %57 : vector<1x128x128xbf16> to vector<128x128xbf16>
    %cst_35 = arith.constant dense<0.000000e+00> : vector<32x128xf32>
    %59 = tpu.matmul %56, %58, %cst_35 {dimension_numbers = #tpu.dot_dimension_numbers<[1], [0], [0], [1], [0, 0, 1, 1], [], []>} : vector<32x128xbf16>, vector<128x128xbf16>, vector<32x128xf32> -> vector<32x128xf32>
    %c3 = arith.constant 3 : index
    %c0_36 = arith.constant 0 : index
    %60 = vector.load %arg6[%c3, %c0_36] : memref<8x128xf32, #tpu.memory_space<vmem>>, vector<1x128xf32>
    %61 = vector.broadcast %60 : vector<1x128xf32> to vector<32x128xf32>
    %62 = arith.addf %59, %61 : vector<32x128xf32>
    %c0_37 = arith.constant 0 : index
    %c0_38 = arith.constant 0 : index
    %63 = vector.load %arg7[%c0_37, %c0_38] : memref<32x128xf32, #tpu.memory_space<vmem>>, vector<32x128xf32>
    tpu.vector_store %arg7[%c0_37, %c0_38], %62 {strides = array<i32>} : memref<32x128xf32, #tpu.memory_space<vmem>>, vector<32x128xf32>,
    return
  }
  func.func @transform_0(%arg0: i32) -> (i32, i32) {
    %c0_i32 = arith.constant 0 : i32
    %c0_i32_0 = arith.constant 0 : i32
    return %arg0, %c0_i32 : i32, i32
  }
  func.func @transform_1(%arg0: i32) -> (i32, i32) {
    %c0_i32 = arith.constant 0 : i32
    %c0_i32_0 = arith.constant 0 : i32
    return %arg0, %c0_i32 : i32, i32
  }
  func.func @transform_2(%arg0: i32) -> (i32, i32) {
    %c0_i32 = arith.constant 0 : i32
    %c0_i32_0 = arith.constant 0 : i32
    %c0_i32_1 = arith.constant 0 : i32
    return %c0_i32, %c0_i32_0 : i32, i32
  }
  func.func @transform_3(%arg0: i32) -> (i32, i32) {
    %c0_i32 = arith.constant 0 : i32
    %c0_i32_0 = arith.constant 0 : i32
    %c0_i32_1 = arith.constant 0 : i32
    return %c0_i32, %c0_i32_0 : i32, i32
  }
  func.func @transform_4(%arg0: i32) -> (i32, i32, i32) {
    %c0_i32 = arith.constant 0 : i32
    %c0_i32_0 = arith.constant 0 : i32
    %c0_i32_1 = arith.constant 0 : i32
    %c0_i32_2 = arith.constant 0 : i32
    return %c0_i32, %c0_i32_0, %c0_i32_1 : i32, i32, i32
  }
  func.func @transform_5(%arg0: i32) -> (i32, i32) {
    %c0_i32 = arith.constant 0 : i32
    %c0_i32_0 = arith.constant 0 : i32
    %c0_i32_1 = arith.constant 0 : i32
    return %c0_i32, %c0_i32_0 : i32, i32
  }
  func.func @transform_6(%arg0: i32) -> (i32, i32) {
    %c0_i32 = arith.constant 0 : i32
    %c0_i32_0 = arith.constant 0 : i32
    return %arg0, %c0_i32 : i32, i32
  }
}

</mosaic_0001>

<llo_original>
// kernel: mul.7
$region0: #{mul.7}
  #allocation2 [shape = 's32[1]{0}', space=sflag, size = 0x4, scoped, tag = 'scoped memory for mul.7']
  %s0 = inlined_call_operand.<no memory space> [shape: f32[], index: 0, kind: input, shape index: {}]
  %s1 = inlined_call_operand.hbm [shape: f32[64], index: 1, kind: output, shape index: {}]
  %v2 = vstv %s0
  $region1: #{mul.7} parent=0
    #allocation0 [shape = 'u8[512]{0}', space=vmem, size = 0x400, scoped, tag = 'operand span for operand 1']
    #allocation1 [shape = 's32[1]{0}', space=sflag, size = 0x4, scoped, tag = 'scoped memory for mul.7']
    %3 = vsyncpa [#allocation1], 0
    %4 = vst [vmem:[#allocation0] sm:$0x1] %v2
    %s6 = ssub.s32 16, 16
    %7 = vsyncadd [#allocation1], %s6
    %s9 = sshll.u32 [#allocation0], 4
    %s10 = int_to_ptr.vmem [resolvable:$true] %s9
    %12 = dma.vmem_to_hbm [thread:$0]  %s10, 16, %s1, [#allocation1]
    %13 = dma.done [#allocation1], 16
    %14 = vsyncpa [#allocation1], 1

// kernel: evaluate.1
$region0: #{evaluate.1}
  #allocation0 [shape = 'u32[]', space=smem, size = 0x4, offset = 0x4, fixed_abs, tag = 'smem constant byte address 0x4 - core index']
  #allocation1 [shape = 'u32[144,128]{1,0:T(1,128)}', space=vmem, size = 0x12000, scoped, tag = 'internal scratch']
  %s0 = inlined_call_operand.vmem [shape: f32[64,16], index: 0, kind: input, shape index: {}]
  %s1 = inlined_call_operand.vmem [shape: f32[64,32], index: 1, kind: input, shape index: {}]
  %s2 = inlined_call_operand.vmem [shape: bf16[16,128], index: 2, kind: input, shape index: {}]
  %s3 = inlined_call_operand.vmem [shape: bf16[32,128], index: 3, kind: input, shape index: {}]
  %s4 = inlined_call_operand.hbm [shape: bf16[3,128,128], index: 4, kind: input, shape index: {}]
  %s5 = inlined_call_operand.vmem [shape: f32[8,128], index: 5, kind: input, shape index: {}]
  %s6 = inlined_call_operand.vmem [shape: f32[64,128], index: 6, kind: output, shape index: {}]
  %s7 = sld [smem:[#allocation0]]
  $region61: #{evaluate.1} parent=0
    _
  %s9 = ssub.s32 1, %s7
  %s10 = scalar_select 0, %s9, %s7
  $region1: #{evaluate.1} parent=0
    #allocation2 [shape = 'u8[98304]{0}', space=vmem, size = 0x18000, scoped, tag = 'input window, operand 4, single buffered']
    #allocation3 [shape = 's32[2]{0}', space=sflag, size = 0x8, scoped, tag = 'scoped memory for evaluate.1']
    %11 = vsyncpa [#allocation3], 0
    loop: start=0, step=1, limit=4
    $region2: #{evaluate.1} parent=1 // loop_pre_header
      _
    $region3: #{evaluate.1} parent=1 // loop_header
      %s13 = sphi 0, %s17
      %p14 = scmp.ge.s32.totalorder %s13, 4
      %s23 = sphi 0, %s25
      %s26 = sphi 0, %s23
      %s27 = sphi 0, %s26
      %s43 = sphi 0, %s27
      %s49 = sphi 0, %s51
      %s52 = sphi 0, %s49
      %s53 = sphi 0, %s52
      %s69 = sphi 0, %s53
      %s73 = sphi 0, %s73
      %s75 = sphi 0, %s73
      %s76 = sphi 0, %s75
      %s90 = sphi 0, %s76
      %s94 = sphi 0, %s94
      %s96 = sphi 0, %s94
      %s97 = sphi 0, %s96
      %s111 = sphi 0, %s97
      %s115 = sphi 0, %s115
      %s117 = sphi 0, %s115
      %s118 = sphi 0, %s117
      %s132 = sphi 0, %s118
      %s136 = sphi 0, %s136
      %s138 = sphi 0, %s136
      %s139 = sphi 0, %s138
      %s153 = sphi 0, %s139
      %s159 = sphi 0, %s161
      %s162 = sphi 0, %s159
      %s163 = sphi 0, %s162
      %s179 = sphi 0, %s163
    $region4: #{evaluate.1} parent=1 // loop_header_branch
      %16 = sbr.rel (%p14) target = $region8
    $region5: #{evaluate.1} parent=1 // loop_body
      %s18 = ssub.s32 %s13, 1
      %s19 = ssub.s32 %s13, 2
      %s20 = sadd.s32 %s13, 1
      %s21 = ssub.s32 %s13, %s20
      %p22 = scmp.eq.s32.totalorder %s21, 0
      %s24 = sadd.s32 %s23, 1
      %s25 = scalar_select %p22, %s23, %s24
      %p28 = pneg %p22
      %p29 = scmp.eq.s32.totalorder %s13, 1
      %p30 = por %p28, %p29
      %p31 = scmp.ne.s32.totalorder %s23, %s26
      %p32 = scmp.eq.s32.totalorder %s13, 0
      %p33 = por %p31, %p32
      %p34 = scmp.ne.s32.totalorder %s23, %s26
      %p35 = scmp.eq.s32.totalorder %s18, 1
      %p36 = por %p34, %p35
      %p37 = scmp.ne.s32.totalorder %s26, %s27
      %p38 = scmp.eq.s32.totalorder %s18, 0
      %p39 = por %p37, %p38
      %p40 = scmp.ne.s32.totalorder %s26, %s27
      %p41 = scmp.eq.s32.totalorder %s19, 1
      %p42 = por %p40, %p41
      %p44 = scmp.ne.s32.totalorder %s27, %s43
      %p45 = scmp.eq.s32.totalorder %s19, 0
      %p46 = por %p44, %p45
      %s47 = ssub.s32 %s13, %s20
      %p48 = scmp.eq.s32.totalorder %s47, 0
      %s50 = sadd.s32 %s49, 1
      %s51 = scalar_select %p48, %s49, %s50
      %p54 = pneg %p48
      %p55 = scmp.eq.s32.totalorder %s13, 1
      %p56 = por %p54, %p55
      %p57 = scmp.ne.s32.totalorder %s49, %s52
      %p58 = scmp.eq.s32.totalorder %s13, 0
      %p59 = por %p57, %p58
      %p60 = scmp.ne.s32.totalorder %s49, %s52
      %p61 = scmp.eq.s32.totalorder %s18, 1
      %p62 = por %p60, %p61
      %p63 = scmp.ne.s32.totalorder %s52, %s53
      %p64 = scmp.eq.s32.totalorder %s18, 0
      %p65 = por %p63, %p64
      %p66 = scmp.ne.s32.totalorder %s52, %s53
      %p67 = scmp.eq.s32.totalorder %s19, 1
      %p68 = por %p66, %p67
      %p70 = scmp.ne.s32.totalorder %s53, %s69
      %p71 = scmp.eq.s32.totalorder %s19, 0
      %p72 = por %p70, %p71
      %s74 = sadd.s32 %s73, 1
      %p77 = scmp.eq.s32.totalorder %s13, 1
      %p78 = scmp.ne.s32.totalorder %s73, %s75
      %p79 = scmp.eq.s32.totalorder %s13, 0
      %p80 = por %p78, %p79
      %p81 = scmp.ne.s32.totalorder %s73, %s75
      %p82 = scmp.eq.s32.totalorder %s18, 1
      %p83 = por %p81, %p82
      %p84 = scmp.ne.s32.totalorder %s75, %s76
      %p85 = scmp.eq.s32.totalorder %s18, 0
      %p86 = por %p84, %p85
      %p87 = scmp.ne.s32.totalorder %s75, %s76
      %p88 = scmp.eq.s32.totalorder %s19, 1
      %p89 = por %p87, %p88
      %p91 = scmp.ne.s32.totalorder %s76, %s90
      %p92 = scmp.eq.s32.totalorder %s19, 0
      %p93 = por %p91, %p92
      %s95 = sadd.s32 %s94, 1
      %p98 = scmp.eq.s32.totalorder %s13, 1
      %p99 = scmp.ne.s32.totalorder %s94, %s96
      %p100 = scmp.eq.s32.totalorder %s13, 0
      %p101 = por %p99, %p100
      %p102 = scmp.ne.s32.totalorder %s94, %s96
      %p103 = scmp.eq.s32.totalorder %s18, 1
      %p104 = por %p102, %p103
      %p105 = scmp.ne.s32.totalorder %s96, %s97
      %p106 = scmp.eq.s32.totalorder %s18, 0
      %p107 = por %p105, %p106
      %p108 = scmp.ne.s32.totalorder %s96, %s97
      %p109 = scmp.eq.s32.totalorder %s19, 1
      %p110 = por %p108, %p109
      %p112 = scmp.ne.s32.totalorder %s97, %s111
      %p113 = scmp.eq.s32.totalorder %s19, 0
      %p114 = por %p112, %p113
      %s116 = sadd.s32 %s115, 1
      %p119 = scmp.eq.s32.totalorder %s13, 1
      %p120 = scmp.ne.s32.totalorder %s115, %s117
      %p121 = scmp.eq.s32.totalorder %s13, 0
      %p122 = por %p120, %p121
      %p123 = scmp.ne.s32.totalorder %s115, %s117
      %p124 = scmp.eq.s32.totalorder %s18, 1
      %p125 = por %p123, %p124
      %p126 = scmp.ne.s32.totalorder %s117, %s118
      %p127 = scmp.eq.s32.totalorder %s18, 0
      %p128 = por %p126, %p127
      %p129 = scmp.ne.s32.totalorder %s117, %s118
      %p130 = scmp.eq.s32.totalorder %s19, 1
      %p131 = por %p129, %p130
      %p133 = scmp.ne.s32.totalorder %s118, %s132
      %p134 = scmp.eq.s32.totalorder %s19, 0
      %p135 = por %p133, %p134
      %s137 = sadd.s32 %s136, 1
      %p140 = scmp.eq.s32.totalorder %s13, 1
      %p141 = scmp.ne.s32.totalorder %s136, %s138
      %p142 = scmp.eq.s32.totalorder %s13, 0
      %p143 = por %p141, %p142
      %p144 = scmp.ne.s32.totalorder %s136, %s138
      %p145 = scmp.eq.s32.totalorder %s18, 1
      %p146 = por %p144, %p145
      %p147 = scmp.ne.s32.totalorder %s138, %s139
      %p148 = scmp.eq.s32.totalorder %s18, 0
      %p149 = por %p147, %p148
      %p150 = scmp.ne.s32.totalorder %s138, %s139
      %p151 = scmp.eq.s32.totalorder %s19, 1
      %p152 = por %p150, %p151
      %p154 = scmp.ne.s32.totalorder %s139, %s153
      %p155 = scmp.eq.s32.totalorder %s19, 0
      %p156 = por %p154, %p155
      %s157 = ssub.s32 %s13, %s20
      %p158 = scmp.eq.s32.totalorder %s157, 0
      %s160 = sadd.s32 %s159, 1
      %s161 = scalar_select %p158, %s159, %s160
      %p164 = pneg %p158
      %p165 = scmp.eq.s32.totalorder %s13, 1
      %p166 = por %p164, %p165
      %p167 = scmp.ne.s32.totalorder %s159, %s162
      %p168 = scmp.eq.s32.totalorder %s13, 0
      %p169 = por %p167, %p168
      %p170 = scmp.ne.s32.totalorder %s159, %s162
      %p171 = scmp.eq.s32.totalorder %s18, 1
      %p172 = por %p170, %p171
      %p173 = scmp.ne.s32.totalorder %s162, %s163
      %p174 = scmp.eq.s32.totalorder %s18, 0
      %p175 = por %p173, %p174
      %p176 = scmp.ne.s32.totalorder %s162, %s163
      %p177 = scmp.eq.s32.totalorder %s19, 1
      %p178 = por %p176, %p177
      %p180 = scmp.ne.s32.totalorder %s163, %s179
      %p181 = scmp.eq.s32.totalorder %s19, 0
      %p182 = por %p180, %p181
      %p183 = scmp.le.s32.totalorder 1, %s13
      %p184 = scmp.lt.s32.totalorder %s13, 3
      %p185 = pnand %p183, %p184
      %p186 = pneg %p185
      // Predicated region
      $region9: #{evaluate.1} parent=5 // pred_check
        _
      $region10: #{evaluate.1} parent=5 // pred_check_branch
        %188 = sbr.rel (%p185) target = $region12
      $region11: #{evaluate.1} parent=5 // pred_region
        %s189 = ssub.s32 %s13, 1
        // Predicated region
        $region13: #{evaluate.1} parent=11 // pred_check
          %p190 = pneg %p86
        $region14: #{evaluate.1} parent=11 // pred_check_branch
          %192 = sbr.rel (%p190) target = $region16
        $region15: #{evaluate.1} parent=11 // pred_region
          _
        $region16: #{evaluate.1} parent=11 // pred_fallthru
          _
        // Predicated region
        $region17: #{evaluate.1} parent=11 // pred_check
          %p193 = pneg %p107
        $region18: #{evaluate.1} parent=11 // pred_check_branch
          %195 = sbr.rel (%p193) target = $region20
        $region19: #{evaluate.1} parent=11 // pred_region
          _
        $region20: #{evaluate.1} parent=11 // pred_fallthru
          _
        // Predicated region
        $region21: #{evaluate.1} parent=11 // pred_check
          %p196 = pneg %p128
        $region22: #{evaluate.1} parent=11 // pred_check_branch
          %198 = sbr.rel (%p196) target = $region24
        $region23: #{evaluate.1} parent=11 // pred_region
          %s200 = ssub.s32 3072, 3072
          %201 = vsyncadd [#allocation3], %s200
          %s202 = sshll.u32 [#allocation2], 4
          %s203 = int_to_ptr.vmem [resolvable:$true] %s202
          %208 = dma.hbm_to_vmem [thread:$0]  %s4, 3072, %s203, [#allocation3], 64, 64, 4
        $region24: #{evaluate.1} parent=11 // pred_fallthru
          _
        // Predicated region
        $region25: #{evaluate.1} parent=11 // pred_check
          %p209 = pneg %p149
        $region26: #{evaluate.1} parent=11 // pred_check_branch
          %211 = sbr.rel (%p209) target = $region28
        $region27: #{evaluate.1} parent=11 // pred_region
          _
        $region28: #{evaluate.1} parent=11 // pred_fallthru
          _
      $region12: #{evaluate.1} parent=5 // pred_fallthru
        _
      %p212 = scmp.lt.s32.totalorder %s13, 2
      // Predicated region
      $region29: #{evaluate.1} parent=5 // pred_check
        %p213 = pneg %p212
      $region30: #{evaluate.1} parent=5 // pred_check_branch
        %215 = sbr.rel (%p213) target = $region32
      $region31: #{evaluate.1} parent=5 // pred_region
        // Predicated region
        $region33: #{evaluate.1} parent=31 // pred_check
          %p216 = pneg %p33
        $region34: #{evaluate.1} parent=31 // pred_check_branch
          %218 = sbr.rel (%p216) target = $region36
        $region35: #{evaluate.1} parent=31 // pred_region
          %s219 = smul.u32 4, %s13
          %p220 = scmp.lt.s32.totalorder %s219, 7
          %s221 = scalar_select %p220, %s219, 7
          %s222 = smul.addr %s221, 8
          %s223 = scalar_lea.vmem %s0, %s222
          %s224 = smul.u32 4, %s13
        $region36: #{evaluate.1} parent=31 // pred_fallthru
          _
        // Predicated region
        $region37: #{evaluate.1} parent=31 // pred_check
          %p225 = pneg %p59
        $region38: #{evaluate.1} parent=31 // pred_check_branch
          %227 = sbr.rel (%p225) target = $region40
        $region39: #{evaluate.1} parent=31 // pred_region
          %s228 = smul.u32 4, %s13
          %p229 = scmp.lt.s32.totalorder %s228, 7
          %s230 = scalar_select %p229, %s228, 7
          %s231 = smul.addr %s230, 8
          %s232 = scalar_lea.vmem %s1, %s231
          %s233 = smul.u32 4, %s13
        $region40: #{evaluate.1} parent=31 // pred_fallthru
          _
      $region32: #{evaluate.1} parent=5 // pred_fallthru
        _
      %p234 = scmp.le.s32.totalorder 1, %s13
      %p235 = scmp.lt.s32.totalorder %s13, 3
      %p236 = pnand %p234, %p235
      %p237 = pneg %p236
      // Predicated region
      $region41: #{evaluate.1} parent=5 // pred_check
        _
      $region42: #{evaluate.1} parent=5 // pred_check_branch
        %239 = sbr.rel (%p236) target = $region44
      $region43: #{evaluate.1} parent=5 // pred_region
        %s240 = ssub.s32 %s13, 1
        // Predicated region
        $region45: #{evaluate.1} parent=43 // pred_check
          %p241 = pneg %p128
        $region46: #{evaluate.1} parent=43 // pred_check_branch
          %243 = sbr.rel (%p241) target = $region48
        $region47: #{evaluate.1} parent=43 // pred_region
          %244 = dma.done [#allocation3], 3072
        $region48: #{evaluate.1} parent=43 // pred_fallthru
          _
        %s245 = smul.u32 4, %s18
        %p246 = scmp.lt.s32.totalorder %s245, 7
        %s247 = scalar_select %p246, %s245, 7
        %s248 = smul.addr %s247, 8
        %s249 = scalar_lea.vmem %s0, %s248
        %p250 = pneg %p39
        %p251 = pneg %p36
        %s252 = smul.u32 4, %s18
        %p253 = scmp.lt.s32.totalorder %s252, 7
        %s254 = scalar_select %p253, %s252, 7
        %s255 = smul.addr %s254, 8
        %s256 = scalar_lea.vmem %s1, %s255
        %p257 = pneg %p65
        %p258 = pneg %p62
        %p259 = pneg %p86
        %p260 = pneg %p83
        %p261 = pneg %p107
        %p262 = pneg %p104
        %p263 = pneg %p128
        %p264 = pneg %p125
        %p265 = pneg %p149
        %p266 = pneg %p146
        %p267 = pneg %p175
        %p268 = pneg %p172
        %s269 = smul.u32 4, %s18
        %p270 = scmp.lt.s32.totalorder %s269, 7
        %s271 = scalar_select %p270, %s269, 7
        %s272 = smul.addr %s271, 8
        %s273 = scalar_lea.vmem %s6, %s272
        %s274 = smul.u32 4, %s18
        %p275 = scmp.lt.s32.totalorder %s274, 7
        %s276 = scalar_select %p275, %s274, 7
        %s277 = smul.addr %s276, 8
        %s278 = scalar_lea.vmem %s0, %s277
        %s279 = smul.u32 4, %s18
        %s280 = smul.u32 4, %s18
        %p281 = scmp.lt.s32.totalorder %s280, 7
        %s282 = scalar_select %p281, %s280, 7
        %s283 = smul.addr %s282, 8
        %s284 = scalar_lea.vmem %s1, %s283
        %s285 = smul.u32 4, %s18
        %s286 = smul.u32 4, %s18
        %p287 = scmp.lt.s32.totalorder %s286, 7
        %s288 = scalar_select %p287, %s286, 7
        %s289 = smul.addr %s288, 8
        %s290 = scalar_lea.vmem %s6, %s289
        %s291 = smul.u32 4, %s18
        %v293 = vld [vmem:[%s278] sm:$0xff]
        %v294 = vld [vmem:[%s278 + $0x8] sm:$0xff]
        %v295 = vld [vmem:[%s278 + $0x10] sm:$0xff]
        %v296 = vld [vmem:[%s278 + $0x18] sm:$0xff]
        %v297 = vpack.c.bf16 %v294, %v293
        %v298 = vpack.c.bf16 %v296, %v295
        %v299 = vld [vmem:[%s2] sm:$0xf]
        %v300 = vld [vmem:[%s2 + $0x4] sm:$0xf]
        %v301 = vld [vmem:[%s284] sm:$0xff]
        %v302 = vld [vmem:[%s284 + $0x8] sm:$0xff]
        %v303 = vld [vmem:[%s284 + $0x10] sm:$0xff]
        %v304 = vld [vmem:[%s284 + $0x18] sm:$0xff]
        %v305 = vpack.c.bf16 %v302, %v301
        %v306 = vpack.c.bf16 %v304, %v303
        %v307 = vld [vmem:[%s3] sm:$0xf]
        %v308 = vld [vmem:[%s3 + $0x4] sm:$0xf]
        %v309 = vld [vmem:[%s3 + $0x8] sm:$0xf]
        %v310 = vld [vmem:[%s3 + $0xc] sm:$0xf]
        %v315 = vunpack.c.l.b16 %v307
        %v316 = vunpack.c.l.b16 %v308
        %v317 = vunpack.c.l.b16 %v309
        %v318 = vunpack.c.l.b16 %v310
        %v319 = vpack.c.b16 %v316, %v315
        %v320 = vpack.c.b16 %v318, %v317
        %vm323 = vcmask 261120
        %v325 = vsel %vm323, %v305, 0
        %v328 = vsel %vm323, %v306, 0
        %330 = vmatprep.subr.bf16.mxu0 0
        %331 = vmatpush1.bf16.msra.mxu0 %v319
        %332 = vmatprep.subr.bf16.mxu0 0
        %333 = vmatpush1.bf16.msra.mxu0 %v320
        %334 = vmatprep.subr.bf16.mxu0 0
        %335 = vmatpush1.bf16.msra.mxu0 0
        %336 = vmatprep.subr.bf16.mxu0 0
        %337 = vmatpush1.bf16.msra.mxu0 0
        %338 = vmatprep.subr.bf16.mxu0 0
        %339 = vmatpush1.bf16.msra.mxu0 0
        %340 = vmatprep.subr.bf16.mxu0 0
        %341 = vmatpush1.bf16.msra.mxu0 0
        %342 = vmatprep.subr.bf16.mxu0 0
        %343 = vmatpush1.bf16.msra.mxu0 0
        %344 = vmatprep.subr.bf16.mxu0 0
        %345 = vmatpush1.bf16.msra.mxu0 0
        %346 = vmatprep.subr.bf16.mxu0 0
        %347 = vmatpush1.bf16.msra.mxu0 0
        %348 = vmatprep.subr.bf16.mxu0 0
        %349 = vmatpush1.bf16.msra.mxu0 0
        %350 = vmatprep.subr.bf16.mxu0 0
        %351 = vmatpush1.bf16.msra.mxu0 0
        %352 = vmatprep.subr.bf16.mxu0 0
        %353 = vmatpush1.bf16.msra.mxu0 0
        %354 = vmatprep.subr.bf16.mxu0 0
        %355 = vmatpush1.bf16.msra.mxu0 0
        %356 = vmatprep.subr.bf16.mxu0 0
        %357 = vmatpush1.bf16.msra.mxu0 0
        %358 = vmatprep.subr.bf16.mxu0 0
        %359 = vmatpush1.bf16.msra.mxu0 0
        %360 = vmatprep.subr.bf16.mxu0 0
        %361 = vmatpush1.bf16.msra.mxu0 0
        %362 = vmatprep.mubr.bf16.mxu0 0
        %363 = vmatmul.mubr.bf16.gmra.mrb[0].mxu0 %v325
        %v364 = vpop.f32.mrb[0].mxu0
        %v365 = vadd.f32 0.0, %v364
        %v366 = vpop.f32.mrb[0].mxu0
        %v367 = vpop.f32.mrb[0].mxu0
        %v368 = vadd.f32 0.0, %v367
        %v369 = vpop.f32.mrb[0].mxu0
        %370 = vmatprep.mubr.bf16.mxu0 0
        %371 = vmatmul.mubr.bf16.gmra.mrb[0].mxu0 %v328
        %v372 = vpop.f32.mrb[0].mxu0
        %v373 = vadd.f32 0.0, %v372
        %v374 = vpop.f32.mrb[0].mxu0
        %v375 = vpop.f32.mrb[0].mxu0
        %v376 = vadd.f32 0.0, %v375
        %v377 = vpop.f32.mrb[0].mxu0
        %378 = vdwg.mxu0
        %v381 = vunpack.c.l.b16 %v299
        %v382 = vunpack.c.l.b16 %v300
        %v383 = vpack.c.b16 %v382, %v381
        %vm385 = vcmask 130048
        %v387 = vsel %vm385, %v297, 0
        %v390 = vsel %vm385, %v298, 0
        %392 = vmatprep.subr.bf16.mxu0 0
        %393 = vmatpush1.bf16.msra.mxu0 %v383
        %394 = vmatprep.subr.bf16.mxu0 0
        %395 = vmatpush1.bf16.msra.mxu0 0
        %396 = vmatprep.subr.bf16.mxu0 0
        %397 = vmatpush1.bf16.msra.mxu0 0
        %398 = vmatprep.subr.bf16.mxu0 0
        %399 = vmatpush1.bf16.msra.mxu0 0
        %400 = vmatprep.subr.bf16.mxu0 0
        %401 = vmatpush1.bf16.msra.mxu0 0
        %402 = vmatprep.subr.bf16.mxu0 0
        %403 = vmatpush1.bf16.msra.mxu0 0
        %404 = vmatprep.subr.bf16.mxu0 0
        %405 = vmatpush1.bf16.msra.mxu0 0
        %406 = vmatprep.subr.bf16.mxu0 0
        %407 = vmatpush1.bf16.msra.mxu0 0
        %408 = vmatprep.subr.bf16.mxu0 0
        %409 = vmatpush1.bf16.msra.mxu0 0
        %410 = vmatprep.subr.bf16.mxu0 0
        %411 = vmatpush1.bf16.msra.mxu0 0
        %412 = vmatprep.subr.bf16.mxu0 0
        %413 = vmatpush1.bf16.msra.mxu0 0
        %414 = vmatprep.subr.bf16.mxu0 0
        %415 = vmatpush1.bf16.msra.mxu0 0
        %416 = vmatprep.subr.bf16.mxu0 0
        %417 = vmatpush1.bf16.msra.mxu0 0
        %418 = vmatprep.subr.bf16.mxu0 0
        %419 = vmatpush1.bf16.msra.mxu0 0
        %420 = vmatprep.subr.bf16.mxu0 0
        %421 = vmatpush1.bf16.msra.mxu0 0
        %422 = vmatprep.subr.bf16.mxu0 0
        %423 = vmatpush1.bf16.msra.mxu0 0
        %424 = vmatprep.mubr.bf16.mxu0 0
        %425 = vmatmul.mubr.bf16.gmra.mrb[0].mxu0 %v387
        %v426 = vpop.f32.mrb[0].mxu0
        %v427 = vadd.f32 %v365, %v426
        %v428 = vpop.f32.mrb[0].mxu0
        %v429 = vpop.f32.mrb[0].mxu0
        %v430 = vadd.f32 %v368, %v429
        %v431 = vpop.f32.mrb[0].mxu0
        %432 = vmatprep.mubr.bf16.mxu0 0
        %433 = vmatmul.mubr.bf16.gmra.mrb[0].mxu0 %v390
        %v434 = vpop.f32.mrb[0].mxu0
        %v435 = vadd.f32 %v373, %v434
        %v436 = vpop.f32.mrb[0].mxu0
        %v437 = vpop.f32.mrb[0].mxu0
        %v438 = vadd.f32 %v376, %v437
        %v439 = vpop.f32.mrb[0].mxu0
        %440 = vdwg.mxu0
        %v441 = vld [vmem:[%s5] sm:$0x1]
        %v442 = vlaneseq
        %v443 = vshrl.u32 %v442, 7
        %v444 = vsub.s32 0, %v443
        %v445 = vrot.slane %v441, %v444
        %v446 = vadd.f32 %v427, %v445
        %v447 = vadd.f32 %v430, %v445
        %v448 = vadd.f32 %v435, %v445
        %v449 = vadd.f32 %v438, %v445
        %vm450 = vcmp.gt.f32.partialorder %v446, 0.0
        %vm451 = vcmp.gt.f32.partialorder %v447, 0.0
        %vm452 = vcmp.gt.f32.partialorder %v448, 0.0
        %vm453 = vcmp.gt.f32.partialorder %v449, 0.0
        %v454 = vmul.f32 %v446, 1.442695
        %v455 = vpow.pop %v454
        %v456 = vmul.f32 %v447, 1.442695
        %v457 = vpow.pop %v456
        %v458 = vmul.f32 %v448, 1.442695
        %v459 = vpow.pop %v458
        %v460 = vmul.f32 %v449, 1.442695
        %v461 = vpow.pop %v460
        %v462 = vsub.f32 %v455, 1.0
        %v463 = vsub.f32 %v457, 1.0
        %v464 = vsub.f32 %v459, 1.0
        %v465 = vsub.f32 %v461, 1.0
        %v466 = vmul.f32 %v462, 1.6732632
        %v467 = vmul.f32 %v463, 1.6732632
        %v468 = vmul.f32 %v464, 1.6732632
        %v469 = vmul.f32 %v465, 1.6732632
        %v470 = vsel %vm450, %v446, %v466
        %v471 = vsel %vm451, %v447, %v467
        %v472 = vsel %vm452, %v448, %v468
        %v473 = vsel %vm453, %v449, %v469
        %v474 = vmul.f32 %v470, 1.050701
        %v475 = vmul.f32 %v471, 1.050701
        %v476 = vmul.f32 %v472, 1.050701
        %v477 = vmul.f32 %v473, 1.050701
        %v478 = vpack.c.bf16 %v475, %v474
        %v479 = vpack.c.bf16 %v477, %v476
        %v480 = vld [vmem:[#allocation2] sm:$0xf]
        %v481 = vld [vmem:[#allocation2 + $0x4] sm:$0xf]
        %v482 = vld [vmem:[#allocation2 + $0x8] sm:$0xf]
        %v483 = vld [vmem:[#allocation2 + $0xc] sm:$0xf]
        %v484 = vld [vmem:[#allocation2 + $0x10] sm:$0xf]
        %v485 = vld [vmem:[#allocation2 + $0x14] sm:$0xf]
        %v486 = vld [vmem:[#allocation2 + $0x18] sm:$0xf]
        %v487 = vld [vmem:[#allocation2 + $0x1c] sm:$0xf]
        %v488 = vld [vmem:[#allocation2 + $0x20] sm:$0xf]
        %v489 = vld [vmem:[#allocation2 + $0x24] sm:$0xf]
        %v490 = vld [vmem:[#allocation2 + $0x28] sm:$0xf]
        %v491 = vld [vmem:[#allocation2 + $0x2c] sm:$0xf]
        %v492 = vld [vmem:[#allocation2 + $0x30] sm:$0xf]
        %v493 = vld [vmem:[#allocation2 + $0x34] sm:$0xf]
        %v494 = vld [vmem:[#allocation2 + $0x38] sm:$0xf]
        %v495 = vld [vmem:[#allocation2 + $0x3c] sm:$0xf]
        %v496 = vld [vmem:[%s5 + $0x1] sm:$0x1]
        %v497 = vlaneseq
        %v498 = vshrl.u32 %v497, 7
        %v499 = vsub.s32 0, %v498
        %v500 = vrot.slane %v496, %v499
        %v517 = vunpack.c.l.b16 %v480
        %v518 = vunpack.c.l.b16 %v481
        %v519 = vunpack.c.l.b16 %v482
        %v520 = vunpack.c.l.b16 %v483
        %v521 = vunpack.c.l.b16 %v484
        %v522 = vunpack.c.l.b16 %v485
        %v523 = vunpack.c.l.b16 %v486
        %v524 = vunpack.c.l.b16 %v487
        %v525 = vunpack.c.l.b16 %v488
        %v526 = vunpack.c.l.b16 %v489
        %v527 = vunpack.c.l.b16 %v490
        %v528 = vunpack.c.l.b16 %v491
        %v529 = vunpack.c.l.b16 %v492
        %v530 = vunpack.c.l.b16 %v493
        %v531 = vunpack.c.l.b16 %v494
        %v532 = vunpack.c.l.b16 %v495
        %v533 = vpack.c.b16 %v518, %v517
        %v534 = vpack.c.b16 %v520, %v519
        %v535 = vpack.c.b16 %v522, %v521
        %v536 = vpack.c.b16 %v524, %v523
        %v537 = vpack.c.b16 %v526, %v525
        %v538 = vpack.c.b16 %v528, %v527
        %v539 = vpack.c.b16 %v530, %v529
        %v540 = vpack.c.b16 %v532, %v531
        %549 = vmatprep.subr.bf16.mxu0 0
        %550 = vmatpush1.bf16.msra.mxu0 %v533
        %551 = vmatprep.subr.bf16.mxu0 0
        %552 = vmatpush1.bf16.msra.mxu0 %v534
        %553 = vmatprep.subr.bf16.mxu0 0
        %554 = vmatpush1.bf16.msra.mxu0 %v535
        %555 = vmatprep.subr.bf16.mxu0 0
        %556 = vmatpush1.bf16.msra.mxu0 %v536
        %557 = vmatprep.subr.bf16.mxu0 0
        %558 = vmatpush1.bf16.msra.mxu0 %v537
        %559 = vmatprep.subr.bf16.mxu0 0
        %560 = vmatpush1.bf16.msra.mxu0 %v538
        %561 = vmatprep.subr.bf16.mxu0 0
        %562 = vmatpush1.bf16.msra.mxu0 %v539
        %563 = vmatprep.subr.bf16.mxu0 0
        %564 = vmatpush1.bf16.msra.mxu0 %v540
        %565 = vmatprep.subr.bf16.mxu0 0
        %566 = vmatpush1.bf16.msra.mxu0 0
        %567 = vmatprep.subr.bf16.mxu0 0
        %568 = vmatpush1.bf16.msra.mxu0 0
        %569 = vmatprep.subr.bf16.mxu0 0
        %570 = vmatpush1.bf16.msra.mxu0 0
        %571 = vmatprep.subr.bf16.mxu0 0
        %572 = vmatpush1.bf16.msra.mxu0 0
        %573 = vmatprep.subr.bf16.mxu0 0
        %574 = vmatpush1.bf16.msra.mxu0 0
        %575 = vmatprep.subr.bf16.mxu0 0
        %576 = vmatpush1.bf16.msra.mxu0 0
        %577 = vmatprep.subr.bf16.mxu0 0
        %578 = vmatpush1.bf16.msra.mxu0 0
        %579 = vmatprep.subr.bf16.mxu0 0
        %580 = vmatpush1.bf16.msra.mxu0 0
        %581 = vmatprep.mubr.bf16.mxu0 0
        %582 = vmatmul.mubr.bf16.gmra.mrb[0].mxu0 %v478
        %v583 = vpop.f32.mrb[0].mxu0
        %v584 = vadd.f32 %v500, %v583
        %v585 = vpop.f32.mrb[0].mxu0
        %v586 = vpop.f32.mrb[0].mxu0
        %v587 = vadd.f32 %v500, %v586
        %v588 = vpop.f32.mrb[0].mxu0
        %589 = vmatprep.mubr.bf16.mxu0 0
        %590 = vmatmul.mubr.bf16.gmra.mrb[0].mxu0 %v479
        %v591 = vpop.f32.mrb[0].mxu0
        %v592 = vadd.f32 %v500, %v591
        %v593 = vpop.f32.mrb[0].mxu0
        %v594 = vpop.f32.mrb[0].mxu0
        %v595 = vadd.f32 %v500, %v594
        %v596 = vpop.f32.mrb[0].mxu0
        %597 = vdwg.mxu0
        %vm598 = vcmp.gt.f32.partialorder %v584, 0.0
        %vm599 = vcmp.gt.f32.partialorder %v587, 0.0
        %vm600 = vcmp.gt.f32.partialorder %v592, 0.0
        %vm601 = vcmp.gt.f32.partialorder %v595, 0.0
        %v602 = vmul.f32 %v584, 1.442695
        %v603 = vpow.pop %v602
        %v604 = vmul.f32 %v587, 1.442695
        %v605 = vpow.pop %v604
        %v606 = vmul.f32 %v592, 1.442695
        %v607 = vpow.pop %v606
        %v608 = vmul.f32 %v595, 1.442695
        %v609 = vpow.pop %v608
        %v610 = vsub.f32 %v603, 1.0
        %v611 = vsub.f32 %v605, 1.0
        %v612 = vsub.f32 %v607, 1.0
        %v613 = vsub.f32 %v609, 1.0
        %v614 = vmul.f32 %v610, 1.6732632
        %v615 = vmul.f32 %v611, 1.6732632
        %v616 = vmul.f32 %v612, 1.6732632
        %v617 = vmul.f32 %v613, 1.6732632
        %v618 = vsel %vm598, %v584, %v614
        %v619 = vsel %vm599, %v587, %v615
        %v620 = vsel %vm600, %v592, %v616
        %v621 = vsel %vm601, %v595, %v617
        %v622 = vmul.f32 %v618, 1.050701
        %v623 = vmul.f32 %v619, 1.050701
        %v624 = vmul.f32 %v620, 1.050701
        %v625 = vmul.f32 %v621, 1.050701
        %v626 = vpack.c.bf16 %v623, %v622
        %v627 = vpack.c.bf16 %v625, %v624
        %s628 = scalar_lea.vmem [#allocation2], 64
        %v629 = vld [vmem:[%s628] sm:$0xf]
        %v630 = vld [vmem:[%s628 + $0x4] sm:$0xf]
        %v631 = vld [vmem:[%s628 + $0x8] sm:$0xf]
        %v632 = vld [vmem:[%s628 + $0xc] sm:$0xf]
        %v633 = vld [vmem:[%s628 + $0x10] sm:$0xf]
        %v634 = vld [vmem:[%s628 + $0x14] sm:$0xf]
        %v635 = vld [vmem:[%s628 + $0x18] sm:$0xf]
        %v636 = vld [vmem:[%s628 + $0x1c] sm:$0xf]
        %v637 = vld [vmem:[%s628 + $0x20] sm:$0xf]
        %v638 = vld [vmem:[%s628 + $0x24] sm:$0xf]
        %v639 = vld [vmem:[%s628 + $0x28] sm:$0xf]
        %v640 = vld [vmem:[%s628 + $0x2c] sm:$0xf]
        %v641 = vld [vmem:[%s628 + $0x30] sm:$0xf]
        %v642 = vld [vmem:[%s628 + $0x34] sm:$0xf]
        %v643 = vld [vmem:[%s628 + $0x38] sm:$0xf]
        %v644 = vld [vmem:[%s628 + $0x3c] sm:$0xf]
        %v645 = vld [vmem:[%s5 + $0x2] sm:$0x1]
        %v646 = vlaneseq
        %v647 = vshrl.u32 %v646, 7
        %v648 = vsub.s32 0, %v647
        %v649 = vrot.slane %v645, %v648
        %v666 = vunpack.c.l.b16 %v629
        %v667 = vunpack.c.l.b16 %v630
        %v668 = vunpack.c.l.b16 %v631
        %v669 = vunpack.c.l.b16 %v632
        %v670 = vunpack.c.l.b16 %v633
        %v671 = vunpack.c.l.b16 %v634
        %v672 = vunpack.c.l.b16 %v635
        %v673 = vunpack.c.l.b16 %v636
        %v674 = vunpack.c.l.b16 %v637
        %v675 = vunpack.c.l.b16 %v638
        %v676 = vunpack.c.l.b16 %v639
        %v677 = vunpack.c.l.b16 %v640
        %v678 = vunpack.c.l.b16 %v641
        %v679 = vunpack.c.l.b16 %v642
        %v680 = vunpack.c.l.b16 %v643
        %v681 = vunpack.c.l.b16 %v644
        %v682 = vpack.c.b16 %v667, %v666
        %v683 = vpack.c.b16 %v669, %v668
        %v684 = vpack.c.b16 %v671, %v670
        %v685 = vpack.c.b16 %v673, %v672
        %v686 = vpack.c.b16 %v675, %v674
        %v687 = vpack.c.b16 %v677, %v676
        %v688 = vpack.c.b16 %v679, %v678
        %v689 = vpack.c.b16 %v681, %v680
        %698 = vmatprep.subr.bf16.mxu0 0
        %699 = vmatpush1.bf16.msra.mxu0 %v682
        %700 = vmatprep.subr.bf16.mxu0 0
        %701 = vmatpush1.bf16.msra.mxu0 %v683
        %702 = vmatprep.subr.bf16.mxu0 0
        %703 = vmatpush1.bf16.msra.mxu0 %v684
        %704 = vmatprep.subr.bf16.mxu0 0
        %705 = vmatpush1.bf16.msra.mxu0 %v685
        %706 = vmatprep.subr.bf16.mxu0 0
        %707 = vmatpush1.bf16.msra.mxu0 %v686
        %708 = vmatprep.subr.bf16.mxu0 0
        %709 = vmatpush1.bf16.msra.mxu0 %v687
        %710 = vmatprep.subr.bf16.mxu0 0
        %711 = vmatpush1.bf16.msra.mxu0 %v688
        %712 = vmatprep.subr.bf16.mxu0 0
        %713 = vmatpush1.bf16.msra.mxu0 %v689
        %714 = vmatprep.subr.bf16.mxu0 0
        %715 = vmatpush1.bf16.msra.mxu0 0
        %716 = vmatprep.subr.bf16.mxu0 0
        %717 = vmatpush1.bf16.msra.mxu0 0
        %718 = vmatprep.subr.bf16.mxu0 0
        %719 = vmatpush1.bf16.msra.mxu0 0
        %720 = vmatprep.subr.bf16.mxu0 0
        %721 = vmatpush1.bf16.msra.mxu0 0
        %722 = vmatprep.subr.bf16.mxu0 0
        %723 = vmatpush1.bf16.msra.mxu0 0
        %724 = vmatprep.subr.bf16.mxu0 0
        %725 = vmatpush1.bf16.msra.mxu0 0
        %726 = vmatprep.subr.bf16.mxu0 0
        %727 = vmatpush1.bf16.msra.mxu0 0
        %728 = vmatprep.subr.bf16.mxu0 0
        %729 = vmatpush1.bf16.msra.mxu0 0
        %730 = vmatprep.mubr.bf16.mxu0 0
        %731 = vmatmul.mubr.bf16.gmra.mrb[0].mxu0 %v626
        %v732 = vpop.f32.mrb[0].mxu0
        %v733 = vadd.f32 %v649, %v732
        %v734 = vpop.f32.mrb[0].mxu0
        %v735 = vpop.f32.mrb[0].mxu0
        %v736 = vadd.f32 %v649, %v735
        %v737 = vpop.f32.mrb[0].mxu0
        %738 = vmatprep.mubr.bf16.mxu0 0
        %739 = vmatmul.mubr.bf16.gmra.mrb[0].mxu0 %v627
        %v740 = vpop.f32.mrb[0].mxu0
        %v741 = vadd.f32 %v649, %v740
        %v742 = vpop.f32.mrb[0].mxu0
        %v743 = vpop.f32.mrb[0].mxu0
        %v744 = vadd.f32 %v649, %v743
        %v745 = vpop.f32.mrb[0].mxu0
        %746 = vdwg.mxu0
        %vm747 = vcmp.gt.f32.partialorder %v733, 0.0
        %vm748 = vcmp.gt.f32.partialorder %v736, 0.0
        %vm749 = vcmp.gt.f32.partialorder %v741, 0.0
        %vm750 = vcmp.gt.f32.partialorder %v744, 0.0
        %v751 = vmul.f32 %v733, 1.442695
        %v752 = vpow.pop %v751
        %v753 = vmul.f32 %v736, 1.442695
        %v754 = vpow.pop %v753
        %v755 = vmul.f32 %v741, 1.442695
        %v756 = vpow.pop %v755
        %v757 = vmul.f32 %v744, 1.442695
        %v758 = vpow.pop %v757
        %v759 = vsub.f32 %v752, 1.0
        %v760 = vsub.f32 %v754, 1.0
        %v761 = vsub.f32 %v756, 1.0
        %v762 = vsub.f32 %v758, 1.0
        %v763 = vmul.f32 %v759, 1.6732632
        %v764 = vmul.f32 %v760, 1.6732632
        %v765 = vmul.f32 %v761, 1.6732632
        %v766 = vmul.f32 %v762, 1.6732632
        %v767 = vsel %vm747, %v733, %v763
        %v768 = vsel %vm748, %v736, %v764
        %v769 = vsel %vm749, %v741, %v765
        %v770 = vsel %vm750, %v744, %v766
        %v771 = vmul.f32 %v767, 1.050701
        %v772 = vmul.f32 %v768, 1.050701
        %v773 = vmul.f32 %v769, 1.050701
        %v774 = vmul.f32 %v770, 1.050701
        %v775 = vpack.c.bf16 %v772, %v771
        %v776 = vpack.c.bf16 %v774, %v773
        %s777 = scalar_lea.vmem [#allocation2], 128
        %v778 = vld [vmem:[%s777] sm:$0xf]
        %v779 = vld [vmem:[%s777 + $0x4] sm:$0xf]
        %v780 = vld [vmem:[%s777 + $0x8] sm:$0xf]
        %v781 = vld [vmem:[%s777 + $0xc] sm:$0xf]
        %v782 = vld [vmem:[%s777 + $0x10] sm:$0xf]
        %v783 = vld [vmem:[%s777 + $0x14] sm:$0xf]
        %v784 = vld [vmem:[%s777 + $0x18] sm:$0xf]
        %v785 = vld [vmem:[%s777 + $0x1c] sm:$0xf]
        %v786 = vld [vmem:[%s777 + $0x20] sm:$0xf]
        %v787 = vld [vmem:[%s777 + $0x24] sm:$0xf]
        %v788 = vld [vmem:[%s777 + $0x28] sm:$0xf]
        %v789 = vld [vmem:[%s777 + $0x2c] sm:$0xf]
        %v790 = vld [vmem:[%s777 + $0x30] sm:$0xf]
        %v791 = vld [vmem:[%s777 + $0x34] sm:$0xf]
        %v792 = vld [vmem:[%s777 + $0x38] sm:$0xf]
        %v793 = vld [vmem:[%s777 + $0x3c] sm:$0xf]
        %v794 = vld [vmem:[%s5 + $0x3] sm:$0x1]
        %v795 = vlaneseq
        %v796 = vshrl.u32 %v795, 7
        %v797 = vsub.s32 0, %v796
        %v798 = vrot.slane %v794, %v797
        %v815 = vunpack.c.l.b16 %v778
        %v816 = vunpack.c.l.b16 %v779
        %v817 = vunpack.c.l.b16 %v780
        %v818 = vunpack.c.l.b16 %v781
        %v819 = vunpack.c.l.b16 %v782
        %v820 = vunpack.c.l.b16 %v783
        %v821 = vunpack.c.l.b16 %v784
        %v822 = vunpack.c.l.b16 %v785
        %v823 = vunpack.c.l.b16 %v786
        %v824 = vunpack.c.l.b16 %v787
        %v825 = vunpack.c.l.b16 %v788
        %v826 = vunpack.c.l.b16 %v789
        %v827 = vunpack.c.l.b16 %v790
        %v828 = vunpack.c.l.b16 %v791
        %v829 = vunpack.c.l.b16 %v792
        %v830 = vunpack.c.l.b16 %v793
        %v831 = vpack.c.b16 %v816, %v815
        %v832 = vpack.c.b16 %v818, %v817
        %v833 = vpack.c.b16 %v820, %v819
        %v834 = vpack.c.b16 %v822, %v821
        %v835 = vpack.c.b16 %v824, %v823
        %v836 = vpack.c.b16 %v826, %v825
        %v837 = vpack.c.b16 %v828, %v827
        %v838 = vpack.c.b16 %v830, %v829
        %847 = vmatprep.subr.bf16.mxu0 0
        %848 = vmatpush1.bf16.msra.mxu0 %v831
        %849 = vmatprep.subr.bf16.mxu0 0
        %850 = vmatpush1.bf16.msra.mxu0 %v832
        %851 = vmatprep.subr.bf16.mxu0 0
        %852 = vmatpush1.bf16.msra.mxu0 %v833
        %853 = vmatprep.subr.bf16.mxu0 0
        %854 = vmatpush1.bf16.msra.mxu0 %v834
        %855 = vmatprep.subr.bf16.mxu0 0
        %856 = vmatpush1.bf16.msra.mxu0 %v835
        %857 = vmatprep.subr.bf16.mxu0 0
        %858 = vmatpush1.bf16.msra.mxu0 %v836
        %859 = vmatprep.subr.bf16.mxu0 0
        %860 = vmatpush1.bf16.msra.mxu0 %v837
        %861 = vmatprep.subr.bf16.mxu0 0
        %862 = vmatpush1.bf16.msra.mxu0 %v838
        %863 = vmatprep.subr.bf16.mxu0 0
        %864 = vmatpush1.bf16.msra.mxu0 0
        %865 = vmatprep.subr.bf16.mxu0 0
        %866 = vmatpush1.bf16.msra.mxu0 0
        %867 = vmatprep.subr.bf16.mxu0 0
        %868 = vmatpush1.bf16.msra.mxu0 0
        %869 = vmatprep.subr.bf16.mxu0 0
        %870 = vmatpush1.bf16.msra.mxu0 0
        %871 = vmatprep.subr.bf16.mxu0 0
        %872 = vmatpush1.bf16.msra.mxu0 0
        %873 = vmatprep.subr.bf16.mxu0 0
        %874 = vmatpush1.bf16.msra.mxu0 0
        %875 = vmatprep.subr.bf16.mxu0 0
        %876 = vmatpush1.bf16.msra.mxu0 0
        %877 = vmatprep.subr.bf16.mxu0 0
        %878 = vmatpush1.bf16.msra.mxu0 0
        %879 = vmatprep.mubr.bf16.mxu0 0
        %880 = vmatmul.mubr.bf16.gmra.mrb[0].mxu0 %v775
        %v881 = vpop.f32.mrb[0].mxu0
        %v882 = vadd.f32 %v798, %v881
        %v883 = vpop.f32.mrb[0].mxu0
        %v884 = vpop.f32.mrb[0].mxu0
        %v885 = vadd.f32 %v798, %v884
        %v886 = vpop.f32.mrb[0].mxu0
        %887 = vmatprep.mubr.bf16.mxu0 0
        %888 = vmatmul.mubr.bf16.gmra.mrb[0].mxu0 %v776
        %v889 = vpop.f32.mrb[0].mxu0
        %v890 = vadd.f32 %v798, %v889
        %v891 = vpop.f32.mrb[0].mxu0
        %v892 = vpop.f32.mrb[0].mxu0
        %v893 = vadd.f32 %v798, %v892
        %v894 = vpop.f32.mrb[0].mxu0
        %895 = vdwg.mxu0
        %896 = vst [vmem:[%s290] sm:$0xff] %v882
        %897 = vst [vmem:[%s290 + $0x8] sm:$0xff] %v885
        %898 = vst [vmem:[%s290 + $0x10] sm:$0xff] %v890
        %899 = vst [vmem:[%s290 + $0x18] sm:$0xff] %v893
        %s900 = smul.u32 4, %s18
        %p901 = scmp.lt.s32.totalorder %s900, 7
        %s902 = scalar_select %p901, %s900, 7
        %s903 = smul.addr %s902, 8
        %s904 = scalar_lea.vmem %s6, %s903
        // Predicated region
        $region49: #{evaluate.1} parent=43 // pred_check
          %p905 = pneg %p172
        $region50: #{evaluate.1} parent=43 // pred_check_branch
          %907 = sbr.rel (%p905) target = $region52
        $region51: #{evaluate.1} parent=43 // pred_region
          %s908 = smul.u32 4, %s18
        $region52: #{evaluate.1} parent=43 // pred_fallthru
          _
      $region44: #{evaluate.1} parent=5 // pred_fallthru
        _
      %p909 = scmp.le.s32.totalorder 2, %s13
      // Predicated region
      $region53: #{evaluate.1} parent=5 // pred_check
        %p910 = pneg %p909
      $region54: #{evaluate.1} parent=5 // pred_check_branch
        %912 = sbr.rel (%p910) target = $region56
      $region55: #{evaluate.1} parent=5 // pred_region
        %s913 = ssub.s32 %s13, 2
        // Predicated region
        $region57: #{evaluate.1} parent=55 // pred_check
          %p914 = pneg %p178
        $region58: #{evaluate.1} parent=55 // pred_check_branch
          %916 = sbr.rel (%p914) target = $region60
        $region59: #{evaluate.1} parent=55 // pred_region
          %s917 = smul.u32 4, %s19
          %p918 = scmp.lt.s32.totalorder %s917, 7
          %s919 = scalar_select %p918, %s917, 7
          %s920 = smul.addr %s919, 8
          %s921 = scalar_lea.vmem %s6, %s920
        $region60: #{evaluate.1} parent=55 // pred_fallthru
          _
      $region56: #{evaluate.1} parent=5 // pred_fallthru
        _
    $region6: #{evaluate.1} parent=1 // loop_footer
      %s17 = sadd.s32 1, %s13
    $region7: #{evaluate.1} parent=1 // loop_footer_branch
      %12 = sbr.rel target = $region3
    $region8: #{evaluate.1} parent=1 // loop_exit
      _
    %922 = vsyncpa [#allocation3], 1
    %s923 = scalar_lea.sflag [#allocation3], 1
    %924 = vsyncpa %s923, 1

</llo_original>
